<compile_context>
chip_gen: v7x
topology: tpu7x:2x2x1
jax: 0.10.0
libtpu: 0.0.40
codegen_flags: <defaults>
</compile_context>

<pallas_src>
import jax
import jax.numpy as jnp
from jax.experimental import pallas as pl
from jax.experimental.pallas import tpu as pltpu


def _embedding_kernel(x_ref, wt_ref, b_ref, o_ref):
    # x_ref:  (TM, K)   activation tile (streamed)
    # wt_ref: (K, N)    transposed weight (full, resident across grid steps)
    # b_ref:  (1, N)    bias row (resident)
    # o_ref:  (TM, N)   output tile
    acc = jnp.dot(x_ref[...], wt_ref[...], preferred_element_type=jnp.float32)
    o_ref[...] = (acc + b_ref[...]).astype(o_ref.dtype)


def _round_up(v, mult):
    return ((v + mult - 1) // mult) * mult


def _choose_tile_m(m, requested):
    """Rows per grid step: multiple of 8 (sublane), capped at `requested`.

    For large M, aim for >= 2 grid steps so v7x's second TensorCore gets work.
    Tile stays small enough (<= requested <= 2048 by default usage) to fit the
    scoped VMEM budget on all of v5e / v6e / v7x.
    """
    requested = max(8, _round_up(requested, 8))
    if m <= 512:
        # Small problem: one tile covering all rows (rounded to sublane).
        return min(requested, _round_up(m, 8))
    two_way = _round_up(-(-m // 2), 256)  # split into >= 2 MXU-aligned chunks
    return max(256, min(requested, two_way))


def with_type_embedding_forward(x, weight, bias, *, tile_m=1024):
    """x: (..., initial_dim) f32; weight: (embed_dim, initial_dim); bias: (embed_dim,)."""
    orig_shape = x.shape
    k = orig_shape[-1]
    n = weight.shape[0]
    x2 = x.reshape(-1, k)
    m = x2.shape[0]

    tm = _choose_tile_m(m, tile_m)
    grid = (pl.cdiv(m, tm),)          # partial last block handled by Pallas masking

    wt = weight.T                     # (K, N), lane-dense output dim
    b2 = bias.reshape(1, n)           # (1, N)

    itemsize = jnp.dtype(x.dtype).itemsize
    cost = pl.CostEstimate(
        flops=2 * m * k * n,
        transcendentals=0,
        bytes_accessed=(m * k + m * n) * itemsize + (k * n + n) * 4,
    )

    out = pl.pallas_call(
        _embedding_kernel,
        out_shape=jax.ShapeDtypeStruct((m, n), x.dtype),
        grid_spec=pltpu.PrefetchScalarGridSpec(
            num_scalar_prefetch=0,
            grid=grid,
            in_specs=[
                pl.BlockSpec((tm, k), lambda i: (i, 0)),   # x tile (streamed)
                pl.BlockSpec((k, n), lambda i: (0, 0)),    # full W^T, resident
                pl.BlockSpec((1, n), lambda i: (0, 0)),    # bias, resident
            ],
            out_specs=pl.BlockSpec((tm, n), lambda i: (i, 0)),
        ),
        compiler_params=pltpu.CompilerParams(
            dimension_semantics=("parallel",),             # megacore-shardable axis
            vmem_limit_bytes=32 * 1024 * 1024,             # safe on v5e/v6e/v7x
        ),
        cost_estimate=cost,
    )(x2, wt, b2)

    return out.reshape(*orig_shape[:-1], n)


def init_params(key, initial_dim=70, embed_dim=128):
    # nn.init.xavier_normal_ on weight of shape (embed_dim, initial_dim):
    # std = sqrt(2 / (fan_in + fan_out)); bias = 0.
    std = (2.0 / (initial_dim + embed_dim)) ** 0.5
    weight = std * jax.random.normal(key, (embed_dim, initial_dim), dtype=jnp.float32)
    bias = jnp.zeros((embed_dim,), dtype=jnp.float32)
    return weight, bias


if __name__ == "__main__":
    initial_dim, embed_dim = 70, 128
    batch, seq = 2, 8

    key = jax.random.PRNGKey(0)
    k_w, k_x = jax.random.split(key)
    weight, bias = init_params(k_w, initial_dim, embed_dim)
    x = jax.random.normal(k_x, (batch, seq, initial_dim), dtype=jnp.float32)

    y = with_type_embedding_forward(x, weight, bias)
    y = jax.block_until_ready(y)

    # Reference check (pure JAX) for correctness.
    y_ref = x @ weight.T + bias
    assert y.shape == (batch, seq, embed_dim)
    assert jnp.allclose(y, y_ref, atol=1e-5, rtol=1e-5)

    print("KERNEL_OK")
</pallas_src>

<mosaic_0001>
module attributes {stable_mosaic.version = 11 : i64} {
  func.func @_embedding_kernel(%arg0: i32, %arg1: memref<16x70xf32, #tpu.memory_space<vmem>>, %arg2: memref<70x128xf32, #tpu.memory_space<vmem>>, %arg3: memref<1x128xf32, #tpu.memory_space<vmem>>, %arg4: memref<16x128xf32, #tpu.memory_space<vmem>>) attributes {dimension_semantics = [#tpu.dimension_semantics<parallel>], iteration_bounds = array<i64: 1>, scalar_prefetch = 0 : i64, scratch_operands = 0 : i64, tpu.core_type = #tpu.core_type<tc>, window_params = [{transform_indices = @transform_0, window_bounds = array<i64: 16, 70>}, {pipeline_mode = #tpu.pipeline_mode<synchronous>, transform_indices = @transform_1, window_bounds = array<i64: 70, 128>}, {pipeline_mode = #tpu.pipeline_mode<synchronous>, transform_indices = @transform_2, window_bounds = array<i64: 1, 128>}, {transform_indices = @transform_3, window_bounds = array<i64: 16, 128>}]} {
    %c0 = arith.constant 0 : index
    %c0_0 = arith.constant 0 : index
    %0 = vector.load %arg1[%c0, %c0_0] : memref<16x70xf32, #tpu.memory_space<vmem>>, vector<16x70xf32>
    %c0_1 = arith.constant 0 : index
    %c0_2 = arith.constant 0 : index
    %1 = vector.load %arg2[%c0_1, %c0_2] : memref<70x128xf32, #tpu.memory_space<vmem>>, vector<70x128xf32>
    %cst = arith.constant dense<0.000000e+00> : vector<16x128xf32>
    %2 = tpu.matmul %0, %1, %cst {dimension_numbers = #tpu.dot_dimension_numbers<[1], [0], [0], [1], [0, 0, 1, 1], [], []>} : vector<16x70xf32>, vector<70x128xf32>, vector<16x128xf32> -> vector<16x128xf32>
    %c0_3 = arith.constant 0 : index
    %c0_4 = arith.constant 0 : index
    %3 = vector.load %arg3[%c0_3, %c0_4] : memref<1x128xf32, #tpu.memory_space<vmem>>, vector<1x128xf32>
    %4 = vector.broadcast %3 : vector<1x128xf32> to vector<16x128xf32>
    %5 = arith.addf %2, %4 : vector<16x128xf32>
    %c0_5 = arith.constant 0 : index
    %c0_6 = arith.constant 0 : index
    %6 = vector.load %arg4[%c0_5, %c0_6] : memref<16x128xf32, #tpu.memory_space<vmem>>, vector<16x128xf32>
    tpu.vector_store %arg4[%c0_5, %c0_6], %5 {strides = array<i32>} : memref<16x128xf32, #tpu.memory_space<vmem>>, vector<16x128xf32>,
    return
  }
  func.func @transform_0(%arg0: i32) -> (i32, i32) {
    %c0_i32 = arith.constant 0 : i32
    %c0_i32_0 = arith.constant 0 : i32
    return %arg0, %c0_i32 : i32, i32
  }
  func.func @transform_1(%arg0: i32) -> (i32, i32) {
    %c0_i32 = arith.constant 0 : i32
    %c0_i32_0 = arith.constant 0 : i32
    %c0_i32_1 = arith.constant 0 : i32
    return %c0_i32, %c0_i32_0 : i32, i32
  }
  func.func @transform_2(%arg0: i32) -> (i32, i32) {
    %c0_i32 = arith.constant 0 : i32
    %c0_i32_0 = arith.constant 0 : i32
    %c0_i32_1 = arith.constant 0 : i32
    return %c0_i32, %c0_i32_0 : i32, i32
  }
  func.func @transform_3(%arg0: i32) -> (i32, i32) {
    %c0_i32 = arith.constant 0 : i32
    %c0_i32_0 = arith.constant 0 : i32
    return %arg0, %c0_i32 : i32, i32
  }
}

</mosaic_0001>

<llo_original>
// kernel: tpu_custom_call.1
$region0: #{tpu_custom_call.1}
  #allocation0 [shape = 'u32[]', space=smem, size = 0x4, offset = 0x4, fixed_abs, tag = 'smem constant byte address 0x4 - core index']
  #allocation1 [shape = 'u32[144,128]{1,0:T(1,128)}', space=vmem, size = 0x12000, scoped, tag = 'internal scratch']
  %s0 = inlined_call_operand.hbm [shape: f32[16,70], index: 0, kind: input, shape index: {}]
  %s1 = inlined_call_operand.hbm [shape: f32[70,128], index: 1, kind: input, shape index: {}]
  %s2 = inlined_call_operand.vmem [shape: f32[1,128], index: 2, kind: input, shape index: {}]
  %s3 = inlined_call_operand.hbm [shape: f32[16,128], index: 3, kind: output, shape index: {}]
  %s4 = sld [smem:[#allocation0]]
  $region30: #{tpu_custom_call.1} parent=0
    _
  %s6 = ssub.s32 1, %s4
  %s7 = scalar_select 0, %s6, %s4
  $region1: #{tpu_custom_call.1} parent=0
    #allocation2 [shape = 'u8[8192]{0}', space=vmem, size = 0x2000, scoped, tag = 'input window, operand 0, single buffered']
    #allocation3 [shape = 's32[1]{0}', space=sflag, size = 0x4, scoped, tag = 'scoped memory for tpu_custom_call.1']
    #allocation4 [shape = 's32[1]{0}', space=sflag, size = 0x4, scoped, tag = 'scoped memory for tpu_custom_call.1']
    #allocation5 [shape = 'u8[36864]{0}', space=vmem, size = 0x9000, scoped, tag = 'input window, operand 1, single buffered']
    #allocation6 [shape = 's32[1]{0}', space=sflag, size = 0x4, scoped, tag = 'scoped memory for tpu_custom_call.1']
    #allocation7 [shape = 'u8[8192]{0}', space=vmem, size = 0x2000, scoped, tag = 'output window, operand 0, single buffered']
    %8 = vsyncpa [#allocation3], 0
    %9 = vsyncpa [#allocation6], 0
    %10 = vsyncpa [#allocation4], 0
    // Predicated region
    $region2: #{tpu_custom_call.1} parent=1 // pred_check
      _
    $region3: #{tpu_custom_call.1} parent=1 // pred_check_branch
      %12 = sbr.rel (0) target = $region5
    $region4: #{tpu_custom_call.1} parent=1 // pred_region
      %s14 = ssub.s32 256, 256
      %15 = vsyncadd [#allocation3], %s14
      %s16 = sshll.u32 [#allocation2], 4
      %s17 = int_to_ptr.vmem [resolvable:$true] %s16
      %22 = dma.hbm_to_vmem [thread:$0]  %s0, 256, %s17, [#allocation3], 128, 128, 8
    $region5: #{tpu_custom_call.1} parent=1 // pred_fallthru
      _
    // Predicated region
    $region6: #{tpu_custom_call.1} parent=1 // pred_check
      _
    $region7: #{tpu_custom_call.1} parent=1 // pred_check_branch
      %24 = sbr.rel (0) target = $region9
    $region8: #{tpu_custom_call.1} parent=1 // pred_region
      %s26 = ssub.s32 1152, 1152
      %27 = vsyncadd [#allocation6], %s26
      %s28 = sshll.u32 [#allocation5], 4
      %s29 = int_to_ptr.vmem [resolvable:$true] %s28
      %34 = dma.hbm_to_vmem [thread:$0]  %s1, 1152, %s29, [#allocation6], 128, 128, 8
    $region9: #{tpu_custom_call.1} parent=1 // pred_fallthru
      _
    // Predicated region
    $region10: #{tpu_custom_call.1} parent=1 // pred_check
      _
    $region11: #{tpu_custom_call.1} parent=1 // pred_check_branch
      %36 = sbr.rel (0) target = $region13
    $region12: #{tpu_custom_call.1} parent=1 // pred_region
      _
    $region13: #{tpu_custom_call.1} parent=1 // pred_fallthru
      _
    // Predicated region
    $region14: #{tpu_custom_call.1} parent=1 // pred_check
      _
    $region15: #{tpu_custom_call.1} parent=1 // pred_check_branch
      %38 = sbr.rel (0) target = $region17
    $region16: #{tpu_custom_call.1} parent=1 // pred_region
      %39 = dma.done [#allocation3], 256
    $region17: #{tpu_custom_call.1} parent=1 // pred_fallthru
      _
    // Predicated region
    $region18: #{tpu_custom_call.1} parent=1 // pred_check
      _
    $region19: #{tpu_custom_call.1} parent=1 // pred_check_branch
      %41 = sbr.rel (0) target = $region21
    $region20: #{tpu_custom_call.1} parent=1 // pred_region
      %42 = dma.done [#allocation6], 1152
    $region21: #{tpu_custom_call.1} parent=1 // pred_fallthru
      _
    %v43 = vld [vmem:[#allocation2] sm:$0xff]
    %v44 = vld [vmem:[#allocation2 + $0x8] sm:$0xff]
    %v45 = vld [vmem:[#allocation5] sm:$0xff]
    %v46 = vld [vmem:[#allocation5 + $0x8] sm:$0xff]
    %v47 = vld [vmem:[#allocation5 + $0x10] sm:$0xff]
    %v48 = vld [vmem:[#allocation5 + $0x18] sm:$0xff]
    %v49 = vld [vmem:[#allocation5 + $0x20] sm:$0xff]
    %v50 = vld [vmem:[#allocation5 + $0x28] sm:$0xff]
    %v51 = vld [vmem:[#allocation5 + $0x30] sm:$0xff]
    %v52 = vld [vmem:[#allocation5 + $0x38] sm:$0xff]
    %v53 = vld [vmem:[#allocation5 + $0x40] sm:$0x3f]
    %v54 = vld [vmem:[%s2] sm:$0x1]
    %v56 = vlaneseq
    %v57 = vshrl.u32 %v56, 7
    %v58 = vsub.s32 0, %v57
    %v59 = vrot.slane %v54, %v58
    %vm61 = vcmask 572416
    %v63 = vsel %vm61, %v43, 0
    %v66 = vsel %vm61, %v44, 0
    %vm68 = vcmask 1045504
    %v70 = vsel %vm68, %v53, 0
    %72 = vmatprep.subr.mxu0 0.0
    %73 = vmatpush1.msra.mxu0 %v45
    %74 = vmatprep.subr.mxu0 0.0
    %75 = vmatpush1.msra.mxu0 %v46
    %76 = vmatprep.subr.mxu0 0.0
    %77 = vmatpush1.msra.mxu0 %v47
    %78 = vmatprep.subr.mxu0 0.0
    %79 = vmatpush1.msra.mxu0 %v48
    %80 = vmatprep.subr.mxu0 0.0
    %81 = vmatpush1.msra.mxu0 %v49
    %82 = vmatprep.subr.mxu0 0.0
    %83 = vmatpush1.msra.mxu0 %v50
    %84 = vmatprep.subr.mxu0 0.0
    %85 = vmatpush1.msra.mxu0 %v51
    %86 = vmatprep.subr.mxu0 0.0
    %87 = vmatpush1.msra.mxu0 %v52
    %88 = vmatprep.subr.mxu0 0.0
    %89 = vmatpush1.msra.mxu0 %v70
    %90 = vmatprep.subr.mxu0 0.0
    %91 = vmatpush1.msra.mxu0 0.0
    %92 = vmatprep.subr.mxu0 0.0
    %93 = vmatpush1.msra.mxu0 0.0
    %94 = vmatprep.subr.mxu0 0.0
    %95 = vmatpush1.msra.mxu0 0.0
    %96 = vmatprep.subr.mxu0 0.0
    %97 = vmatpush1.msra.mxu0 0.0
    %98 = vmatprep.subr.mxu0 0.0
    %99 = vmatpush1.msra.mxu0 0.0
    %100 = vmatprep.subr.mxu0 0.0
    %101 = vmatpush1.msra.mxu0 0.0
    %102 = vmatprep.subr.mxu0 0.0
    %103 = vmatpush1.msra.mxu0 0.0
    %104 = vmatprep.subr.mxu0 0.0
    %105 = vmatpush1.msra.mxu0 0.0
    %106 = vmatprep.subr.mxu0 0.0
    %107 = vmatpush1.msra.mxu0 0.0
    %108 = vmatprep.subr.mxu0 0.0
    %109 = vmatpush1.msra.mxu0 0.0
    %110 = vmatprep.subr.mxu0 0.0
    %111 = vmatpush1.msra.mxu0 0.0
    %112 = vmatprep.subr.mxu0 0.0
    %113 = vmatpush1.msra.mxu0 0.0
    %114 = vmatprep.subr.mxu0 0.0
    %115 = vmatpush1.msra.mxu0 0.0
    %116 = vmatprep.subr.mxu0 0.0
    %117 = vmatpush1.msra.mxu0 0.0
    %118 = vmatprep.subr.mxu0 0.0
    %119 = vmatpush1.msra.mxu0 0.0
    %120 = vmatprep.subr.mxu0 0.0
    %121 = vmatpush1.msra.mxu0 0.0
    %122 = vmatprep.subr.mxu0 0.0
    %123 = vmatpush1.msra.mxu0 0.0
    %124 = vmatprep.subr.mxu0 0.0
    %125 = vmatpush1.msra.mxu0 0.0
    %126 = vmatprep.subr.mxu0 0.0
    %127 = vmatpush1.msra.mxu0 0.0
    %128 = vmatprep.subr.mxu0 0.0
    %129 = vmatpush1.msra.mxu0 0.0
    %130 = vmatprep.subr.mxu0 0.0
    %131 = vmatpush1.msra.mxu0 0.0
    %132 = vmatprep.subr.mxu0 0.0
    %133 = vmatpush1.msra.mxu0 0.0
    %134 = vmatprep.subr.mxu0 0.0
    %135 = vmatpush1.msra.mxu0 0.0
    %136 = vmatprep.mubr.f32.mxu0 0.0
    %137 = vmatmul.mubr.f32.gmra.mrb[0].mxu0 %v63
    %v138 = vpop.f32.mrb[0].mxu0
    %v139 = vadd.f32 %v59, %v138
    %v140 = vpop.f32.mrb[0].mxu0
    %141 = vmatprep.mubr.f32.mxu0 0.0
    %142 = vmatmul.mubr.f32.gmra.mrb[0].mxu0 %v66
    %v143 = vpop.f32.mrb[0].mxu0
    %v144 = vadd.f32 %v59, %v143
    %v145 = vpop.f32.mrb[0].mxu0
    %146 = vdwg.mxu0
    %147 = vst [vmem:[#allocation7] sm:$0xff] %v139
    %148 = vst [vmem:[#allocation7 + $0x8] sm:$0xff] %v144
    // Predicated region
    $region22: #{tpu_custom_call.1} parent=1 // pred_check
      _
    $region23: #{tpu_custom_call.1} parent=1 // pred_check_branch
      %150 = sbr.rel (0) target = $region25
    $region24: #{tpu_custom_call.1} parent=1 // pred_region
      %s152 = ssub.s32 256, 256
      %153 = vsyncadd [#allocation4], %s152
      %s154 = sshll.u32 [#allocation7], 4
      %s155 = int_to_ptr.vmem [resolvable:$true] %s154
      %160 = dma.vmem_to_hbm [thread:$0]  %s155, 256, %s3, [#allocation4], 128, 128, 8
    $region25: #{tpu_custom_call.1} parent=1 // pred_fallthru
      _
    // Predicated region
    $region26: #{tpu_custom_call.1} parent=1 // pred_check
      _
    $region27: #{tpu_custom_call.1} parent=1 // pred_check_branch
      %162 = sbr.rel (0) target = $region29
    $region28: #{tpu_custom_call.1} parent=1 // pred_region
      %163 = dma.done [#allocation4], 256
    $region29: #{tpu_custom_call.1} parent=1 // pred_fallthru
      _
    %164 = vsyncpa [#allocation3], 1
    %165 = vsyncpa [#allocation6], 1
    %166 = vsyncpa [#allocation4], 1

</llo_original>
